<compile_context>
chip_gen: v7x
topology: tpu7x:2x2x1
jax: 0.10.0
libtpu: 0.0.40
codegen_flags: <defaults>
</compile_context>

<pallas_src>
import math
import functools

import jax
import jax.numpy as jnp
from jax import lax
from jax.experimental import pallas as pl
from jax.experimental.pallas import tpu as pltpu


# ----------------------------- Pallas kernel ---------------------------------

def _mish(v):
    """x * tanh(softplus(x)); one EUP exp + approx reciprocal, f32 throughout."""
    e = jnp.exp(jnp.minimum(v, 20.0))
    num = e * (e + 2.0)
    y = v * num * pl.reciprocal(num + 2.0, approx=True)
    return jnp.where(v > 20.0, v, y)


def fused_denoise_kernel(coef_ref,             # SMEM (8, T)   per-step scalars (t-reversed)
                         x0_ref,               # VMEM (B, A)   initial x_T
                         s_ref,                # VMEM (B, S)   state, f32
                         tcon_ref,             # VMEM (T, 1, H) time-branch contribution
                         noise_ref,            # VMEM (T, B, A) per-step noise
                         w1x_ref, w1s_ref, b1_ref,
                         w2_ref, b2_ref, w3_ref, b3_ref,
                         wf_ref, bf_ref,
                         out_ref,              # VMEM (B, A)   final action
                         *, n_timesteps, max_action):
    # ---- loop-invariant loads / compute (hoisted out of the T-step loop) ----
    w1x = w1x_ref[...]
    w2 = w2_ref[...]
    w3 = w3_ref[...]
    wf = wf_ref[...]
    b2 = b2_ref[...]
    b3 = b3_ref[...]
    bf = bf_ref[...]

    # state branch of layer-1 is constant across all diffusion steps
    scon = (jnp.dot(s_ref[...].astype(jnp.bfloat16), w1s_ref[...],
                    preferred_element_type=jnp.float32) + b1_ref[...])     # (B, H)

    def step(t, x):
        # ---- denoise MLP (time branch precomputed on host; state branch cached) ----
        h = (jnp.dot(x.astype(jnp.bfloat16), w1x,
                     preferred_element_type=jnp.float32)
             + tcon_ref[t] + scon)
        h = _mish(h)
        h = _mish(jnp.dot(h.astype(jnp.bfloat16), w2,
                          preferred_element_type=jnp.float32) + b2)
        h = _mish(jnp.dot(h.astype(jnp.bfloat16), w3,
                          preferred_element_type=jnp.float32) + b3)
        eps = jnp.dot(h.astype(jnp.bfloat16), wf,
                      preferred_element_type=jnp.float32) + bf

        # ---- fused DDPM posterior step (predict_start + q_posterior + p_sample) ----
        c_recip   = coef_ref[0, t]    # sqrt(1/alphas_cumprod[t])
        c_recipm1 = coef_ref[1, t]    # sqrt(1/alphas_cumprod[t] - 1)
        pm1       = coef_ref[2, t]    # posterior_mean_coef1[t]
        pm2       = coef_ref[3, t]    # posterior_mean_coef2[t]
        sigma     = coef_ref[4, t]    # exp(0.5*log_var[t]) * (t > 0)

        x_recon = jnp.clip(c_recip * x - c_recipm1 * eps, -max_action, max_action)
        return pm1 * x_recon + pm2 * x + sigma * noise_ref[t]

    x_final = lax.fori_loop(0, n_timesteps, step, x0_ref[...])
    out_ref[...] = jnp.clip(x_final, -max_action, max_action)   # single writeback


def _vmem_spec():
    return pl.BlockSpec(memory_space=pltpu.MemorySpace.VMEM)


def _mish_host(v):
    return v * jnp.tanh(jax.nn.softplus(v))


@functools.partial(jax.jit, static_argnames=("max_action",))
def diffusion_forward(params, consts, state, key, *, max_action):
    B, S = state.shape
    A = params["wf"].shape[1]
    H = params["w2"].shape[0]
    t_dim = params["wt1"].shape[0]
    T = consts["post_log_var"].shape[0]

    # ---- pad batch to a multiple of 16 (bf16 sublane packing / MXU rows) ----
    B_pad = max(16, -(-B // 16) * 16)
    state_p = jnp.pad(state, ((0, B_pad - B), (0, 0)))

    k_x, k_n = jax.random.split(key)
    x_T = jax.random.normal(k_x, (B_pad, A), jnp.float32)
    noise = jax.random.normal(k_n, (T, B_pad, A), jnp.float32)

    # ---- hoisted time branch: w1t^T . time_mlp(sin_emb(t)) for all t  -> (T, 1, H) ----
    half = t_dim // 2
    freqs = jnp.exp(jnp.arange(half, dtype=jnp.float32)
                    * (-math.log(10000.0) / (half - 1)))
    ang = jnp.arange(T, dtype=jnp.float32)[:, None] * freqs[None, :]
    temb = jnp.concatenate([jnp.sin(ang), jnp.cos(ang)], axis=-1)       # (T, t_dim)
    th = _mish_host(temb @ params["wt1"] + params["bt1"])
    th = th @ params["wt2"] + params["bt2"]
    t_contrib = (th @ params["w1t"]).reshape(T, 1, H)

    # ---- per-step scalar table, (8, T) with long axis last, reversed so that
    #      loop step 0 corresponds to diffusion timestep T-1 ----
    sigma = jnp.exp(0.5 * consts["post_log_var"]).at[0].set(0.0)   # no noise at t == 0
    zeros = jnp.zeros((T,), jnp.float32)
    coefs = jnp.stack([consts["sqrt_recip_ac"], consts["sqrt_recipm1_ac"],
                       consts["post_coef1"], consts["post_coef2"], sigma,
                       zeros, zeros, zeros], axis=0)[:, ::-1]
    t_contrib = t_contrib[::-1]

    # ---- bf16 weights for the MXU (biases & elementwise math stay f32) ----
    w1x = params["w1x"].astype(jnp.bfloat16)
    w1s = params["w1s"].astype(jnp.bfloat16)
    w2 = params["w2"].astype(jnp.bfloat16)
    w3 = params["w3"].astype(jnp.bfloat16)
    wf = params["wf"].astype(jnp.bfloat16)

    kernel = functools.partial(fused_denoise_kernel,
                               n_timesteps=int(T),
                               max_action=float(max_action))
    out = pl.pallas_call(
        kernel,
        out_shape=jax.ShapeDtypeStruct((B_pad, A), jnp.float32),
        in_specs=[
            pl.BlockSpec(memory_space=pltpu.MemorySpace.SMEM),      # coefs (8, T)
            _vmem_spec(),                                           # x_T
            _vmem_spec(),                                           # state
            _vmem_spec(),                                           # t_contrib (T,1,H)
            _vmem_spec(),                                           # noise (T,B,A)
            _vmem_spec(), _vmem_spec(), _vmem_spec(),               # w1x, w1s, b1
            _vmem_spec(), _vmem_spec(),                             # w2, b2
            _vmem_spec(), _vmem_spec(),                             # w3, b3
            _vmem_spec(), _vmem_spec(),                             # wf, bf
        ],
        out_specs=pl.BlockSpec(memory_space=pltpu.MemorySpace.VMEM),
    )(coefs, x_T, state_p, t_contrib, noise,
      w1x, w1s, params["b1"], w2, params["b2"], w3, params["b3"],
      wf, params["bf"])
    return out[:B]


# ------------------------------ JAX glue --------------------------------------

def _linear_init(key, fan_in, fan_out):
    """PyTorch nn.Linear default init: U(-1/sqrt(fan_in), 1/sqrt(fan_in))."""
    kw, kb = jax.random.split(key)
    bound = 1.0 / math.sqrt(fan_in)
    w = jax.random.uniform(kw, (fan_in, fan_out), jnp.float32, -bound, bound)
    b = jax.random.uniform(kb, (1, fan_out), jnp.float32, -bound, bound)
    return w, b


def init_mlp_params(key, state_dim, action_dim, hidden_dim, t_dim):
    keys = jax.random.split(key, 6)
    wt1, bt1 = _linear_init(keys[0], t_dim, 2 * t_dim)
    wt2, bt2 = _linear_init(keys[1], 2 * t_dim, t_dim)
    in_dim = action_dim + t_dim + state_dim          # cat order in MLP: [x, t, state]
    w1, b1 = _linear_init(keys[2], in_dim, hidden_dim)
    w2, b2 = _linear_init(keys[3], hidden_dim, hidden_dim)
    w3, b3 = _linear_init(keys[4], hidden_dim, hidden_dim)
    wf, bf = _linear_init(keys[5], hidden_dim, action_dim)
    return dict(
        wt1=wt1, bt1=bt1, wt2=wt2, bt2=bt2,
        w1x=w1[:action_dim], w1t=w1[action_dim:action_dim + t_dim],
        w1s=w1[action_dim + t_dim:], b1=b1,
        w2=w2, b2=b2, w3=w3, b3=b3, wf=wf, bf=bf,
    )


def make_diffusion_consts(n_timesteps, beta_start=1e-4, beta_end=2e-2):
    betas = jnp.linspace(beta_start, beta_end, n_timesteps, dtype=jnp.float32)
    alphas = 1.0 - betas
    ac = jnp.cumprod(alphas)
    ac_prev = jnp.concatenate([jnp.ones((1,), jnp.float32), ac[:-1]])
    post_var = betas * (1.0 - ac_prev) / (1.0 - ac)
    return dict(
        sqrt_recip_ac=jnp.sqrt(1.0 / ac),
        sqrt_recipm1_ac=jnp.sqrt(1.0 / ac - 1.0),
        post_log_var=jnp.log(jnp.clip(post_var, 1e-20, None)),
        post_coef1=betas * jnp.sqrt(ac_prev) / (1.0 - ac),
        post_coef2=(1.0 - ac_prev) * jnp.sqrt(alphas) / (1.0 - ac),
    )


class DiffusionAllocor:
    """JAX/Pallas counterpart of the PyTorch DiffusionAllocor module (forward only)."""

    def __init__(self, state_dim, action_dim, hidden_dim=256, t_dim=16,
                 n_timesteps=100, max_action=1.0, key=jax.random.PRNGKey(0)):
        self.state_dim = state_dim
        self.action_dim = action_dim
        self.max_action = float(max_action)
        self.params = init_mlp_params(key, state_dim, action_dim, hidden_dim, t_dim)
        self.consts = make_diffusion_consts(n_timesteps)

    def forward(self, state, key):
        return diffusion_forward(self.params, self.consts, state, key,
                                 max_action=self.max_action)

    # TODO(synk): .loss() (q_sample + epsilon regression) not implemented; only forward().


# ------------------------------- demo ------------------------------------------

if __name__ == "__main__":
    key = jax.random.PRNGKey(0)
    k_param, k_state, k_sample = jax.random.split(key, 3)

    BATCH, STATE_DIM, ACTION_DIM, HIDDEN = 4, 16, 4, 32
    # n_timesteps kept small for the synthetic demo (module default is 100).
    model = DiffusionAllocor(STATE_DIM, ACTION_DIM, hidden_dim=HIDDEN,
                             n_timesteps=8, max_action=1.0, key=k_param)

    state = jax.random.normal(k_state, (BATCH, STATE_DIM), jnp.float32)
    action = model.forward(state, k_sample)
    action = jax.block_until_ready(action)

    assert action.shape == (BATCH, ACTION_DIM)
    assert bool(jnp.all(jnp.isfinite(action)))
    assert bool(jnp.all(jnp.abs(action) <= 1.0 + 1e-6))
    print("KERNEL_OK")
</pallas_src>

<mosaic_0001>
module attributes {stable_mosaic.version = 11 : i64} {
  func.func @fused_denoise_kernel(%arg0: memref<8x8xf32, #tpu.memory_space<smem>>, %arg1: memref<16x4xf32, #tpu.memory_space<vmem>>, %arg2: memref<16x16xf32, #tpu.memory_space<vmem>>, %arg3: memref<8x1x32xf32, #tpu.memory_space<vmem>>, %arg4: memref<8x16x4xf32, #tpu.memory_space<vmem>>, %arg5: memref<4x32xbf16, #tpu.memory_space<vmem>>, %arg6: memref<16x32xbf16, #tpu.memory_space<vmem>>, %arg7: memref<1x32xf32, #tpu.memory_space<vmem>>, %arg8: memref<32x32xbf16, #tpu.memory_space<vmem>>, %arg9: memref<1x32xf32, #tpu.memory_space<vmem>>, %arg10: memref<32x32xbf16, #tpu.memory_space<vmem>>, %arg11: memref<1x32xf32, #tpu.memory_space<vmem>>, %arg12: memref<32x4xbf16, #tpu.memory_space<vmem>>, %arg13: memref<1x4xf32, #tpu.memory_space<vmem>>, %arg14: memref<16x4xf32, #tpu.memory_space<vmem>>) attributes {dimension_semantics = [], scalar_prefetch = 0 : i64, scratch_operands = 0 : i64, tpu.core_type = #tpu.core_type<tc>} {
    %c0 = arith.constant 0 : index
    %c0_0 = arith.constant 0 : index
    %0 = vector.load %arg5[%c0, %c0_0] : memref<4x32xbf16, #tpu.memory_space<vmem>>, vector<4x32xbf16>
    %c0_1 = arith.constant 0 : index
    %c0_2 = arith.constant 0 : index
    %1 = vector.load %arg8[%c0_1, %c0_2] : memref<32x32xbf16, #tpu.memory_space<vmem>>, vector<32x32xbf16>
    %c0_3 = arith.constant 0 : index
    %c0_4 = arith.constant 0 : index
    %2 = vector.load %arg10[%c0_3, %c0_4] : memref<32x32xbf16, #tpu.memory_space<vmem>>, vector<32x32xbf16>
    %c0_5 = arith.constant 0 : index
    %c0_6 = arith.constant 0 : index
    %3 = vector.load %arg12[%c0_5, %c0_6] : memref<32x4xbf16, #tpu.memory_space<vmem>>, vector<32x4xbf16>
    %c0_7 = arith.constant 0 : index
    %c0_8 = arith.constant 0 : index
    %4 = vector.load %arg9[%c0_7, %c0_8] : memref<1x32xf32, #tpu.memory_space<vmem>>, vector<1x32xf32>
    %c0_9 = arith.constant 0 : index
    %c0_10 = arith.constant 0 : index
    %5 = vector.load %arg11[%c0_9, %c0_10] : memref<1x32xf32, #tpu.memory_space<vmem>>, vector<1x32xf32>
    %c0_11 = arith.constant 0 : index
    %c0_12 = arith.constant 0 : index
    %6 = vector.load %arg13[%c0_11, %c0_12] : memref<1x4xf32, #tpu.memory_space<vmem>>, vector<1x4xf32>
    %c0_13 = arith.constant 0 : index
    %c0_14 = arith.constant 0 : index
    %7 = vector.load %arg2[%c0_13, %c0_14] : memref<16x16xf32, #tpu.memory_space<vmem>>, vector<16x16xf32>
    %8 = arith.truncf %7 : vector<16x16xf32> to vector<16x16xbf16>
    %c0_15 = arith.constant 0 : index
    %c0_16 = arith.constant 0 : index
    %9 = vector.load %arg6[%c0_15, %c0_16] : memref<16x32xbf16, #tpu.memory_space<vmem>>, vector<16x32xbf16>
    %cst = arith.constant dense<0.000000e+00> : vector<16x32xf32>
    %10 = tpu.matmul %8, %9, %cst {dimension_numbers = #tpu.dot_dimension_numbers<[1], [0], [0], [1], [0, 0, 1, 1], [], []>} : vector<16x16xbf16>, vector<16x32xbf16>, vector<16x32xf32> -> vector<16x32xf32>
    %c0_17 = arith.constant 0 : index
    %c0_18 = arith.constant 0 : index
    %11 = vector.load %arg7[%c0_17, %c0_18] : memref<1x32xf32, #tpu.memory_space<vmem>>, vector<1x32xf32>
    %12 = vector.broadcast %11 : vector<1x32xf32> to vector<16x32xf32>
    %13 = arith.addf %10, %12 : vector<16x32xf32>
    %c0_19 = arith.constant 0 : index
    %c0_20 = arith.constant 0 : index
    %14 = vector.load %arg1[%c0_19, %c0_20] : memref<16x4xf32, #tpu.memory_space<vmem>>, vector<16x4xf32>
    %c0_i32 = arith.constant 0 : i32
    %c8_i32 = arith.constant 8 : i32
    %15 = arith.addi %c0_i32, %c8_i32 : i32
    %c1_i32 = arith.constant 1 : i32
    %16 = scf.for %arg15 = %c0_i32 to %15 step %c1_i32 iter_args(%arg16 = %14) -> (vector<16x4xf32>)  : i32 {
      %22 = arith.truncf %arg16 : vector<16x4xf32> to vector<16x4xbf16>
      %cst_26 = arith.constant dense<0.000000e+00> : vector<16x32xf32>
      %23 = tpu.matmul %22, %0, %cst_26 {dimension_numbers = #tpu.dot_dimension_numbers<[1], [0], [0], [1], [0, 0, 1, 1], [], []>} : vector<16x4xbf16>, vector<4x32xbf16>, vector<16x32xf32> -> vector<16x32xf32>
      %24 = arith.index_cast %arg15 : i32 to index
      %c0_27 = arith.constant 0 : index
      %c0_28 = arith.constant 0 : index
      %25 = vector.load %arg3[%24, %c0_27, %c0_28] : memref<8x1x32xf32, #tpu.memory_space<vmem>>, vector<1x1x32xf32>
      %26 = vector.shape_cast %25 : vector<1x1x32xf32> to vector<1x32xf32>
      %27 = vector.broadcast %26 : vector<1x32xf32> to vector<16x32xf32>
      %28 = arith.addf %23, %27 : vector<16x32xf32>
      %29 = arith.addf %28, %13 : vector<16x32xf32>
      %cst_29 = arith.constant 2.000000e+01 : f32
      %30 = vector.broadcast %cst_29 : f32 to vector<16x32xf32>
      %31 = arith.minimumf %29, %30 : vector<16x32xf32>
      %32 = math.exp %31 : vector<16x32xf32>
      %cst_30 = arith.constant 2.000000e+00 : f32
      %33 = vector.broadcast %cst_30 : f32 to vector<16x32xf32>
      %34 = arith.addf %32, %33 : vector<16x32xf32>
      %35 = arith.mulf %32, %34 : vector<16x32xf32>
      %36 = arith.mulf %29, %35 : vector<16x32xf32>
      %cst_31 = arith.constant 2.000000e+00 : f32
      %37 = vector.broadcast %cst_31 : f32 to vector<16x32xf32>
      %38 = arith.addf %35, %37 : vector<16x32xf32>
      %39 = tpu.reciprocal %38 {approx = true} : vector<16x32xf32> -> vector<16x32xf32>
      %40 = arith.mulf %36, %39 : vector<16x32xf32>
      %cst_32 = arith.constant 2.000000e+01 : f32
      %41 = vector.broadcast %cst_32 : f32 to vector<16x32xf32>
      %42 = arith.cmpf ogt, %29, %41 : vector<16x32xf32>
      %43 = arith.select %42, %29, %40 : vector<16x32xi1>, vector<16x32xf32>
      %44 = arith.truncf %43 : vector<16x32xf32> to vector<16x32xbf16>
      %cst_33 = arith.constant dense<0.000000e+00> : vector<16x32xf32>
      %45 = tpu.matmul %44, %1, %cst_33 {dimension_numbers = #tpu.dot_dimension_numbers<[1], [0], [0], [1], [0, 0, 1, 1], [], []>} : vector<16x32xbf16>, vector<32x32xbf16>, vector<16x32xf32> -> vector<16x32xf32>
      %46 = vector.broadcast %4 : vector<1x32xf32> to vector<16x32xf32>
      %47 = arith.addf %45, %46 : vector<16x32xf32>
      %cst_34 = arith.constant 2.000000e+01 : f32
      %48 = vector.broadcast %cst_34 : f32 to vector<16x32xf32>
      %49 = arith.minimumf %47, %48 : vector<16x32xf32>
      %50 = math.exp %49 : vector<16x32xf32>
      %cst_35 = arith.constant 2.000000e+00 : f32
      %51 = vector.broadcast %cst_35 : f32 to vector<16x32xf32>
      %52 = arith.addf %50, %51 : vector<16x32xf32>
      %53 = arith.mulf %50, %52 : vector<16x32xf32>
      %54 = arith.mulf %47, %53 : vector<16x32xf32>
      %cst_36 = arith.constant 2.000000e+00 : f32
      %55 = vector.broadcast %cst_36 : f32 to vector<16x32xf32>
      %56 = arith.addf %53, %55 : vector<16x32xf32>
      %57 = tpu.reciprocal %56 {approx = true} : vector<16x32xf32> -> vector<16x32xf32>
      %58 = arith.mulf %54, %57 : vector<16x32xf32>
      %cst_37 = arith.constant 2.000000e+01 : f32
      %59 = vector.broadcast %cst_37 : f32 to vector<16x32xf32>
      %60 = arith.cmpf ogt, %47, %59 : vector<16x32xf32>
      %61 = arith.select %60, %47, %58 : vector<16x32xi1>, vector<16x32xf32>
      %62 = arith.truncf %61 : vector<16x32xf32> to vector<16x32xbf16>
      %cst_38 = arith.constant dense<0.000000e+00> : vector<16x32xf32>
      %63 = tpu.matmul %62, %2, %cst_38 {dimension_numbers = #tpu.dot_dimension_numbers<[1], [0], [0], [1], [0, 0, 1, 1], [], []>} : vector<16x32xbf16>, vector<32x32xbf16>, vector<16x32xf32> -> vector<16x32xf32>
      %64 = vector.broadcast %5 : vector<1x32xf32> to vector<16x32xf32>
      %65 = arith.addf %63, %64 : vector<16x32xf32>
      %cst_39 = arith.constant 2.000000e+01 : f32
      %66 = vector.broadcast %cst_39 : f32 to vector<16x32xf32>
      %67 = arith.minimumf %65, %66 : vector<16x32xf32>
      %68 = math.exp %67 : vector<16x32xf32>
      %cst_40 = arith.constant 2.000000e+00 : f32
      %69 = vector.broadcast %cst_40 : f32 to vector<16x32xf32>
      %70 = arith.addf %68, %69 : vector<16x32xf32>
      %71 = arith.mulf %68, %70 : vector<16x32xf32>
      %72 = arith.mulf %65, %71 : vector<16x32xf32>
      %cst_41 = arith.constant 2.000000e+00 : f32
      %73 = vector.broadcast %cst_41 : f32 to vector<16x32xf32>
      %74 = arith.addf %71, %73 : vector<16x32xf32>
      %75 = tpu.reciprocal %74 {approx = true} : vector<16x32xf32> -> vector<16x32xf32>
      %76 = arith.mulf %72, %75 : vector<16x32xf32>
      %cst_42 = arith.constant 2.000000e+01 : f32
      %77 = vector.broadcast %cst_42 : f32 to vector<16x32xf32>
      %78 = arith.cmpf ogt, %65, %77 : vector<16x32xf32>
      %79 = arith.select %78, %65, %76 : vector<16x32xi1>, vector<16x32xf32>
      %80 = arith.truncf %79 : vector<16x32xf32> to vector<16x32xbf16>
      %cst_43 = arith.constant dense<0.000000e+00> : vector<16x4xf32>
      %81 = tpu.matmul %80, %3, %cst_43 {dimension_numbers = #tpu.dot_dimension_numbers<[1], [0], [0], [1], [0, 0, 1, 1], [], []>} : vector<16x32xbf16>, vector<32x4xbf16>, vector<16x4xf32> -> vector<16x4xf32>
      %82 = vector.broadcast %6 : vector<1x4xf32> to vector<16x4xf32>
      %83 = arith.addf %81, %82 : vector<16x4xf32>
      %c0_44 = arith.constant 0 : index
      %84 = arith.index_cast %arg15 : i32 to index
      %85 = memref.load %arg0[%c0_44, %84] : memref<8x8xf32, #tpu.memory_space<smem>>
      %c1 = arith.constant 1 : index
      %86 = arith.index_cast %arg15 : i32 to index
      %87 = memref.load %arg0[%c1, %86] : memref<8x8xf32, #tpu.memory_space<smem>>
      %c2 = arith.constant 2 : index
      %88 = arith.index_cast %arg15 : i32 to index
      %89 = memref.load %arg0[%c2, %88] : memref<8x8xf32, #tpu.memory_space<smem>>
      %c3 = arith.constant 3 : index
      %90 = arith.index_cast %arg15 : i32 to index
      %91 = memref.load %arg0[%c3, %90] : memref<8x8xf32, #tpu.memory_space<smem>>
      %c4 = arith.constant 4 : index
      %92 = arith.index_cast %arg15 : i32 to index
      %93 = memref.load %arg0[%c4, %92] : memref<8x8xf32, #tpu.memory_space<smem>>
      %94 = vector.broadcast %85 : f32 to vector<16x4xf32>
      %95 = arith.mulf %94, %arg16 : vector<16x4xf32>
      %96 = vector.broadcast %87 : f32 to vector<16x4xf32>
      %97 = arith.mulf %96, %83 : vector<16x4xf32>
      %98 = arith.subf %95, %97 : vector<16x4xf32>
      %cst_45 = arith.constant -1.000000e+00 : f32
      %cst_46 = arith.constant 1.000000e+00 : f32
      %99 = vector.broadcast %cst_45 : f32 to vector<16x4xf32>
      %100 = arith.maximumf %99, %98 : vector<16x4xf32>
      %101 = vector.broadcast %cst_46 : f32 to vector<16x4xf32>
      %102 = arith.minimumf %101, %100 : vector<16x4xf32>
      %103 = vector.broadcast %89 : f32 to vector<16x4xf32>
      %104 = arith.mulf %103, %102 : vector<16x4xf32>
      %105 = vector.broadcast %91 : f32 to vector<16x4xf32>
      %106 = arith.mulf %105, %arg16 : vector<16x4xf32>
      %107 = arith.addf %104, %106 : vector<16x4xf32>
      %108 = arith.index_cast %arg15 : i32 to index
      %c0_47 = arith.constant 0 : index
      %c0_48 = arith.constant 0 : index
      %109 = vector.load %arg4[%108, %c0_47, %c0_48] : memref<8x16x4xf32, #tpu.memory_space<vmem>>, vector<1x16x4xf32>
      %110 = vector.shape_cast %109 : vector<1x16x4xf32> to vector<16x4xf32>
      %111 = vector.broadcast %93 : f32 to vector<16x4xf32>
      %112 = arith.mulf %111, %110 : vector<16x4xf32>
      %113 = arith.addf %107, %112 : vector<16x4xf32>
      scf.yield %113 : vector<16x4xf32>
    }
    %c8_i32_21 = arith.constant 8 : i32
    %cst_22 = arith.constant -1.000000e+00 : f32
    %cst_23 = arith.constant 1.000000e+00 : f32
    %17 = vector.broadcast %cst_22 : f32 to vector<16x4xf32>
    %18 = arith.maximumf %17, %16 : vector<16x4xf32>
    %19 = vector.broadcast %cst_23 : f32 to vector<16x4xf32>
    %20 = arith.minimumf %19, %18 : vector<16x4xf32>
    %c0_24 = arith.constant 0 : index
    %c0_25 = arith.constant 0 : index
    %21 = vector.load %arg14[%c0_24, %c0_25] : memref<16x4xf32, #tpu.memory_space<vmem>>, vector<16x4xf32>
    tpu.vector_store %arg14[%c0_24, %c0_25], %20 {strides = array<i32>} : memref<16x4xf32, #tpu.memory_space<vmem>>, vector<16x4xf32>,
    return
  }
}

</mosaic_0001>

<llo_original>
// kernel: reverse
$region0: #{reverse}
  %s0 = inlined_call_operand.vmem [shape: f32[8,32], index: 0, kind: input, shape index: {}]
  %s1 = inlined_call_operand.vmem [shape: f32[8,32], index: 1, kind: output, shape index: {}]
  $region1: #{reverse} parent=0
    #allocation0 [shape = 'u8[4096]{0}', space=vmem, size = 0x1000, scoped, tag = 'operand span for operand 0']
    #allocation1 [shape = 'u8[4096]{0}', space=vmem, size = 0x1000, scoped, tag = 'operand span for operand 1']
    // Predicated region
    $region2: #{reverse} parent=1 // pred_check
      _
    $region3: #{reverse} parent=1 // pred_check_branch
      %3 = sbr.rel (0) target = $region5
    $region4: #{reverse} parent=1 // pred_region
      // Predicated region
      $region6: #{reverse} parent=4 // pred_check
        _
      $region7: #{reverse} parent=4 // pred_check_branch
        %5 = sbr.rel (0) target = $region9
      $region8: #{reverse} parent=4 // pred_region
        // Predicated region
        $region21: #{reverse} parent=8 // pred_check
          _
        $region22: #{reverse} parent=8 // pred_check_branch
          %20 = sbr.rel (0) target = $region24
        $region23: #{reverse} parent=8 // pred_region
          loop: start=0, step=1, limit=1
          $region25: #{reverse} parent=23 // loop_pre_header
            _
          $region26: #{reverse} parent=23 // loop_header
            %s22 = sphi 0, %s26
            %p23 = scmp.ge.s32.totalorder %s22, 1
            %s27 = sphi %s0, %s0
            %s28 = sphi [#allocation0], [#allocation0]
          $region27: #{reverse} parent=23 // loop_header_branch
            %25 = sbr.rel (%p23) target = $region31
          $region28: #{reverse} parent=23 // loop_body
            %v29 = vld [vmem:[%s27] sm:$0xff]
            %30 = vst [vmem:[%s28] sm:$0xff] %v29
          $region29: #{reverse} parent=23 // loop_footer
            %s26 = sadd.s32 1, %s22
          $region30: #{reverse} parent=23 // loop_footer_branch
            %21 = sbr.rel target = $region26
          $region31: #{reverse} parent=23 // loop_exit
            _
        $region24: #{reverse} parent=8 // pred_fallthru
          _
        // Predicated region
        $region32: #{reverse} parent=8 // pred_check
          _
        $region33: #{reverse} parent=8 // pred_check_branch
          %32 = sbr.rel target = $region35
        $region34: #{reverse} parent=8 // pred_region
          _
        $region35: #{reverse} parent=8 // pred_fallthru
          _
      $region9: #{reverse} parent=4 // pred_fallthru
        _
      // Predicated region
      $region10: #{reverse} parent=4 // pred_check
        _
      $region11: #{reverse} parent=4 // pred_check_branch
        %7 = sbr.rel target = $region13
      $region12: #{reverse} parent=4 // pred_region
        loop: start=0, step=1, limit=1
        $region14: #{reverse} parent=12 // loop_pre_header
          _
        $region15: #{reverse} parent=12 // loop_header
          %s10 = sphi 0, %s14
          %p11 = scmp.ge.s32.totalorder %s10, 1
          %s15 = sphi %s0, %s0
          %s16 = sphi [#allocation0], [#allocation0]
        $region16: #{reverse} parent=12 // loop_header_branch
          %13 = sbr.rel (%p11) target = $region20
        $region17: #{reverse} parent=12 // loop_body
          %v17 = vld [vmem:[%s15] sm:$0xff]
          %18 = vst [vmem:[%s16] sm:$0xff] %v17
        $region18: #{reverse} parent=12 // loop_footer
          %s14 = sadd.s32 1, %s10
        $region19: #{reverse} parent=12 // loop_footer_branch
          %9 = sbr.rel target = $region15
        $region20: #{reverse} parent=12 // loop_exit
          _
      $region13: #{reverse} parent=4 // pred_fallthru
        _
    $region5: #{reverse} parent=1 // pred_fallthru
      _
    %33 = vnop
    %s34 = scalar_lea.vmem [#allocation0], 7
    %v35 = vld [vmem:[%s34] ss:$-1 sm:$0xff]
    %36 = vst [vmem:[#allocation1] sm:$0xff] %v35
    // Predicated region
    $region36: #{reverse} parent=1 // pred_check
      _
    $region37: #{reverse} parent=1 // pred_check_branch
      %38 = sbr.rel (0) target = $region39
    $region38: #{reverse} parent=1 // pred_region
      // Predicated region
      $region40: #{reverse} parent=38 // pred_check
        _
      $region41: #{reverse} parent=38 // pred_check_branch
        %40 = sbr.rel (0) target = $region43
      $region42: #{reverse} parent=38 // pred_region
        // Predicated region
        $region55: #{reverse} parent=42 // pred_check
          _
        $region56: #{reverse} parent=42 // pred_check_branch
          %55 = sbr.rel (0) target = $region58
        $region57: #{reverse} parent=42 // pred_region
          loop: start=0, step=1, limit=1
          $region59: #{reverse} parent=57 // loop_pre_header
            _
          $region60: #{reverse} parent=57 // loop_header
            %s57 = sphi 0, %s61
            %p58 = scmp.ge.s32.totalorder %s57, 1
            %s62 = sphi [#allocation1], [#allocation1]
            %s63 = sphi %s1, %s1
          $region61: #{reverse} parent=57 // loop_header_branch
            %60 = sbr.rel (%p58) target = $region65
          $region62: #{reverse} parent=57 // loop_body
            %v64 = vld [vmem:[%s62] sm:$0xff]
            %65 = vst [vmem:[%s63] sm:$0xff] %v64
          $region63: #{reverse} parent=57 // loop_footer
            %s61 = sadd.s32 1, %s57
          $region64: #{reverse} parent=57 // loop_footer_branch
            %56 = sbr.rel target = $region60
          $region65: #{reverse} parent=57 // loop_exit
            _
        $region58: #{reverse} parent=42 // pred_fallthru
          _
        // Predicated region
        $region66: #{reverse} parent=42 // pred_check
          _
        $region67: #{reverse} parent=42 // pred_check_branch
          %67 = sbr.rel target = $region69
        $region68: #{reverse} parent=42 // pred_region
          _
        $region69: #{reverse} parent=42 // pred_fallthru
          _
      $region43: #{reverse} parent=38 // pred_fallthru
        _
      // Predicated region
      $region44: #{reverse} parent=38 // pred_check
        _
      $region45: #{reverse} parent=38 // pred_check_branch
        %42 = sbr.rel target = $region47
      $region46: #{reverse} parent=38 // pred_region
        loop: start=0, step=1, limit=1
        $region48: #{reverse} parent=46 // loop_pre_header
          _
        $region49: #{reverse} parent=46 // loop_header
          %s45 = sphi 0, %s49
          %p46 = scmp.ge.s32.totalorder %s45, 1
          %s50 = sphi [#allocation1], [#allocation1]
          %s51 = sphi %s1, %s1
        $region50: #{reverse} parent=46 // loop_header_branch
          %48 = sbr.rel (%p46) target = $region54
        $region51: #{reverse} parent=46 // loop_body
          %v52 = vld [vmem:[%s50] sm:$0xff]
          %53 = vst [vmem:[%s51] sm:$0xff] %v52
        $region52: #{reverse} parent=46 // loop_footer
          %s49 = sadd.s32 1, %s45
        $region53: #{reverse} parent=46 // loop_footer_branch
          %44 = sbr.rel target = $region49
        $region54: #{reverse} parent=46 // loop_exit
          _
      $region47: #{reverse} parent=38 // pred_fallthru
        _
    $region39: #{reverse} parent=1 // pred_fallthru
      _
    %68 = vnop

// kernel: diffusion_forward.3
$region0: #{diffusion_forward.3}
  #allocation0 [shape = 'u32[]', space=smem, size = 0x4, offset = 0x4, fixed_abs, tag = 'smem constant byte address 0x4 - core index']
  #allocation1 [shape = 'u32[144,128]{1,0:T(1,128)}', space=vmem, size = 0x12000, scoped, tag = 'internal scratch']
  %s0 = inlined_call_operand.vmem [shape: f32[8,8], index: 0, kind: input, shape index: {}]
  %s1 = inlined_call_operand.vmem [shape: f32[16,4], index: 1, kind: input, shape index: {}]
  %s2 = inlined_call_operand.vmem [shape: f32[16,16], index: 2, kind: input, shape index: {}]
  %s3 = inlined_call_operand.vmem [shape: f32[8,1,32], index: 3, kind: input, shape index: {}]
  %s4 = inlined_call_operand.vmem [shape: f32[8,16,4], index: 4, kind: input, shape index: {}]
  %s5 = inlined_call_operand.vmem [shape: bf16[4,32], index: 5, kind: input, shape index: {}]
  %s6 = inlined_call_operand.vmem [shape: bf16[16,32], index: 6, kind: input, shape index: {}]
  %s7 = inlined_call_operand.vmem [shape: f32[1,32], index: 7, kind: input, shape index: {}]
  %s8 = inlined_call_operand.vmem [shape: bf16[32,32], index: 8, kind: input, shape index: {}]
  %s9 = inlined_call_operand.vmem [shape: f32[1,32], index: 9, kind: input, shape index: {}]
  %s10 = inlined_call_operand.vmem [shape: bf16[32,32], index: 10, kind: input, shape index: {}]
  %s11 = inlined_call_operand.vmem [shape: f32[1,32], index: 11, kind: input, shape index: {}]
  %s12 = inlined_call_operand.vmem [shape: bf16[32,4], index: 12, kind: input, shape index: {}]
  %s13 = inlined_call_operand.vmem [shape: f32[1,4], index: 13, kind: input, shape index: {}]
  %s14 = inlined_call_operand.vmem [shape: f32[16,4], index: 14, kind: output, shape index: {}]
  %s15 = sld [smem:[#allocation0]]
  $region77: #{diffusion_forward.3} parent=0
    _
  %s17 = ssub.s32 1, %s15
  %s18 = scalar_select 0, %s17, %s15
  $region1: #{diffusion_forward.3} parent=0
    #allocation2 [shape = 'u8[4096]{0}', space=smem, size = 0x1000, scoped, tag = 'input window, operand 0, single buffered']
    #allocation3 [shape = 's32[1]{0}', space=sflag, size = 0x4, scoped, tag = 'scoped memory for diffusion_forward.3']
    %19 = vsyncpa [#allocation3], 0
    // Predicated region
    $region2: #{diffusion_forward.3} parent=1 // pred_check
      _
    $region3: #{diffusion_forward.3} parent=1 // pred_check_branch
      %21 = sbr.rel (0) target = $region5
    $region4: #{diffusion_forward.3} parent=1 // pred_region
      %s23 = ssub.s32 128, 128
      %24 = vsyncadd [#allocation3], %s23
      %s26 = sshll.u32 %s0, 4
      %s27 = int_to_ptr.vmem [resolvable:$true] %s26
      %29 = dma.vmem_to_smem %s27, 128, [#allocation2], [#allocation3]
    $region5: #{diffusion_forward.3} parent=1 // pred_fallthru
      _
    // Predicated region
    $region6: #{diffusion_forward.3} parent=1 // pred_check
      _
    $region7: #{diffusion_forward.3} parent=1 // pred_check_branch
      %31 = sbr.rel (0) target = $region9
    $region8: #{diffusion_forward.3} parent=1 // pred_region
      _
    $region9: #{diffusion_forward.3} parent=1 // pred_fallthru
      _
    // Predicated region
    $region10: #{diffusion_forward.3} parent=1 // pred_check
      _
    $region11: #{diffusion_forward.3} parent=1 // pred_check_branch
      %33 = sbr.rel (0) target = $region13
    $region12: #{diffusion_forward.3} parent=1 // pred_region
      _
    $region13: #{diffusion_forward.3} parent=1 // pred_fallthru
      _
    // Predicated region
    $region14: #{diffusion_forward.3} parent=1 // pred_check
      _
    $region15: #{diffusion_forward.3} parent=1 // pred_check_branch
      %35 = sbr.rel (0) target = $region17
    $region16: #{diffusion_forward.3} parent=1 // pred_region
      _
    $region17: #{diffusion_forward.3} parent=1 // pred_fallthru
      _
    // Predicated region
    $region18: #{diffusion_forward.3} parent=1 // pred_check
      _
    $region19: #{diffusion_forward.3} parent=1 // pred_check_branch
      %37 = sbr.rel (0) target = $region21
    $region20: #{diffusion_forward.3} parent=1 // pred_region
      _
    $region21: #{diffusion_forward.3} parent=1 // pred_fallthru
      _
    // Predicated region
    $region22: #{diffusion_forward.3} parent=1 // pred_check
      _
    $region23: #{diffusion_forward.3} parent=1 // pred_check_branch
      %39 = sbr.rel (0) target = $region25
    $region24: #{diffusion_forward.3} parent=1 // pred_region
      _
    $region25: #{diffusion_forward.3} parent=1 // pred_fallthru
      _
    // Predicated region
    $region26: #{diffusion_forward.3} parent=1 // pred_check
      _
    $region27: #{diffusion_forward.3} parent=1 // pred_check_branch
      %41 = sbr.rel (0) target = $region29
    $region28: #{diffusion_forward.3} parent=1 // pred_region
      _
    $region29: #{diffusion_forward.3} parent=1 // pred_fallthru
      _
    // Predicated region
    $region30: #{diffusion_forward.3} parent=1 // pred_check
      _
    $region31: #{diffusion_forward.3} parent=1 // pred_check_branch
      %43 = sbr.rel (0) target = $region33
    $region32: #{diffusion_forward.3} parent=1 // pred_region
      _
    $region33: #{diffusion_forward.3} parent=1 // pred_fallthru
      _
    // Predicated region
    $region34: #{diffusion_forward.3} parent=1 // pred_check
      _
    $region35: #{diffusion_forward.3} parent=1 // pred_check_branch
      %45 = sbr.rel (0) target = $region37
    $region36: #{diffusion_forward.3} parent=1 // pred_region
      _
    $region37: #{diffusion_forward.3} parent=1 // pred_fallthru
      _
    // Predicated region
    $region38: #{diffusion_forward.3} parent=1 // pred_check
      _
    $region39: #{diffusion_forward.3} parent=1 // pred_check_branch
      %47 = sbr.rel (0) target = $region41
    $region40: #{diffusion_forward.3} parent=1 // pred_region
      _
    $region41: #{diffusion_forward.3} parent=1 // pred_fallthru
      _
    // Predicated region
    $region42: #{diffusion_forward.3} parent=1 // pred_check
      _
    $region43: #{diffusion_forward.3} parent=1 // pred_check_branch
      %49 = sbr.rel (0) target = $region45
    $region44: #{diffusion_forward.3} parent=1 // pred_region
      _
    $region45: #{diffusion_forward.3} parent=1 // pred_fallthru
      _
    // Predicated region
    $region46: #{diffusion_forward.3} parent=1 // pred_check
      _
    $region47: #{diffusion_forward.3} parent=1 // pred_check_branch
      %51 = sbr.rel (0) target = $region49
    $region48: #{diffusion_forward.3} parent=1 // pred_region
      _
    $region49: #{diffusion_forward.3} parent=1 // pred_fallthru
      _
    // Predicated region
    $region50: #{diffusion_forward.3} parent=1 // pred_check
      _
    $region51: #{diffusion_forward.3} parent=1 // pred_check_branch
      %53 = sbr.rel (0) target = $region53
    $region52: #{diffusion_forward.3} parent=1 // pred_region
      _
    $region53: #{diffusion_forward.3} parent=1 // pred_fallthru
      _
    // Predicated region
    $region54: #{diffusion_forward.3} parent=1 // pred_check
      _
    $region55: #{diffusion_forward.3} parent=1 // pred_check_branch
      %55 = sbr.rel (0) target = $region57
    $region56: #{diffusion_forward.3} parent=1 // pred_region
      _
    $region57: #{diffusion_forward.3} parent=1 // pred_fallthru
      _
    // Predicated region
    $region58: #{diffusion_forward.3} parent=1 // pred_check
      _
    $region59: #{diffusion_forward.3} parent=1 // pred_check_branch
      %57 = sbr.rel (0) target = $region61
    $region60: #{diffusion_forward.3} parent=1 // pred_region
      %58 = dma.done [#allocation3], 128
    $region61: #{diffusion_forward.3} parent=1 // pred_fallthru
      _
    %59 = sfence
    %v61 = vld [vmem:[%s5] sm:$0x3]
    %v62 = vld [vmem:[%s8] sm:$0xf]
    %v63 = vld [vmem:[%s8 + $0x4] sm:$0xf]
    %v64 = vld [vmem:[%s8 + $0x8] sm:$0xf]
    %v65 = vld [vmem:[%s8 + $0xc] sm:$0xf]
    %v66 = vld [vmem:[%s10] sm:$0xf]
    %v67 = vld [vmem:[%s10 + $0x4] sm:$0xf]
    %v68 = vld [vmem:[%s10 + $0x8] sm:$0xf]
    %v69 = vld [vmem:[%s10 + $0xc] sm:$0xf]
    %v70 = vld [vmem:[%s12] sm:$0xf]
    %v71 = vld [vmem:[%s12 + $0x4] sm:$0xf]
    %v72 = vld [vmem:[%s12 + $0x8] sm:$0xf]
    %v73 = vld [vmem:[%s12 + $0xc] sm:$0xf]
    %v74 = vld [vmem:[%s9] sm:$0x1]
    %v75 = vld [vmem:[%s11] sm:$0x1]
    %v76 = vld [vmem:[%s13] sm:$0x1]
    %v77 = vld [vmem:[%s2] sm:$0xff]
    %v78 = vld [vmem:[%s2 + $0x8] sm:$0xff]
    %v79 = vpack.c.bf16 %v78, %v77
    %v80 = vld [vmem:[%s6] sm:$0xf]
    %v81 = vld [vmem:[%s6 + $0x4] sm:$0xf]
    %v82 = vld [vmem:[%s7] sm:$0x1]
    %v84 = vlaneseq
    %v85 = vshrl.u32 %v84, 7
    %v86 = vsub.s32 0, %v85
    %v87 = vrot.slane %v82, %v86
    %v91 = vunpack.c.l.b16 %v80
    %v92 = vunpack.c.l.b16 %v81
    %v93 = vpack.c.b16 %v92, %v91
    %vm95 = vcmask 130048
    %v97 = vsel %vm95, %v79, 0
    %99 = vmatprep.subr.bf16.mxu0 0
    %100 = vmatpush1.bf16.msra.mxu0 %v93
    %101 = vmatprep.subr.bf16.mxu0 0
    %102 = vmatpush1.bf16.msra.mxu0 0
    %103 = vmatprep.subr.bf16.mxu0 0
    %104 = vmatpush1.bf16.msra.mxu0 0
    %105 = vmatprep.subr.bf16.mxu0 0
    %106 = vmatpush1.bf16.msra.mxu0 0
    %107 = vmatprep.subr.bf16.mxu0 0
    %108 = vmatpush1.bf16.msra.mxu0 0
    %109 = vmatprep.subr.bf16.mxu0 0
    %110 = vmatpush1.bf16.msra.mxu0 0
    %111 = vmatprep.subr.bf16.mxu0 0
    %112 = vmatpush1.bf16.msra.mxu0 0
    %113 = vmatprep.subr.bf16.mxu0 0
    %114 = vmatpush1.bf16.msra.mxu0 0
    %115 = vmatprep.subr.bf16.mxu0 0
    %116 = vmatpush1.bf16.msra.mxu0 0
    %117 = vmatprep.subr.bf16.mxu0 0
    %118 = vmatpush1.bf16.msra.mxu0 0
    %119 = vmatprep.subr.bf16.mxu0 0
    %120 = vmatpush1.bf16.msra.mxu0 0
    %121 = vmatprep.subr.bf16.mxu0 0
    %122 = vmatpush1.bf16.msra.mxu0 0
    %123 = vmatprep.subr.bf16.mxu0 0
    %124 = vmatpush1.bf16.msra.mxu0 0
    %125 = vmatprep.subr.bf16.mxu0 0
    %126 = vmatpush1.bf16.msra.mxu0 0
    %127 = vmatprep.subr.bf16.mxu0 0
    %128 = vmatpush1.bf16.msra.mxu0 0
    %129 = vmatprep.subr.bf16.mxu0 0
    %130 = vmatpush1.bf16.msra.mxu0 0
    %131 = vmatprep.mubr.bf16.mxu0 0
    %132 = vmatmul.mubr.bf16.gmra.mrb[0].mxu0 %v97
    %v133 = vpop.f32.mrb[0].mxu0
    %v134 = vadd.f32 %v87, %v133
    %v135 = vpop.f32.mrb[0].mxu0
    %v136 = vpop.f32.mrb[0].mxu0
    %v137 = vadd.f32 %v87, %v136
    %v138 = vpop.f32.mrb[0].mxu0
    %139 = vdwg.mxu0
    %v140 = vld [vmem:[%s1] sm:$0xff]
    %v141 = vld [vmem:[%s1 + $0x8] sm:$0xff]
    loop: start=0, step=1, limit=8
    $region62: #{diffusion_forward.3} parent=1 // loop_pre_header
      _
    $region63: #{diffusion_forward.3} parent=1 // loop_header
      %s143 = sphi 0, %s147
      %p144 = scmp.ge.s32.totalorder %s143, 8
      %v148 = vphi %v140, %v514
      %v149 = vphi %v141, %v515
    $region64: #{diffusion_forward.3} parent=1 // loop_header_branch
      %146 = sbr.rel (%p144) target = $region68
    $region65: #{diffusion_forward.3} parent=1 // loop_body
      %v150 = vpack.c.bf16 %v149, %v148
      %s151 = scalar_lea.vmem %s3, %s143
      %v152 = vld [vmem:[%s151] sm:$0x1]
      %v154 = vlaneseq
      %v155 = vshrl.u32 %v154, 7
      %v156 = vsub.s32 0, %v155
      %v157 = vrot.slane %v152, %v156
      %vm159 = vcmask 31744
      %v161 = vsel %vm159, %v150, 0
      %vm163 = vcmask 1041408
      %v165 = vsel %vm163, %v61, 0
      %167 = vmatprep.subr.bf16.mxu0 0
      %168 = vmatpush1.bf16.msra.mxu0 %v165
      %169 = vmatprep.subr.bf16.mxu0 0
      %170 = vmatpush1.bf16.msra.mxu0 0
      %171 = vmatprep.subr.bf16.mxu0 0
      %172 = vmatpush1.bf16.msra.mxu0 0
      %173 = vmatprep.subr.bf16.mxu0 0
      %174 = vmatpush1.bf16.msra.mxu0 0
      %175 = vmatprep.subr.bf16.mxu0 0
      %176 = vmatpush1.bf16.msra.mxu0 0
      %177 = vmatprep.subr.bf16.mxu0 0
      %178 = vmatpush1.bf16.msra.mxu0 0
      %179 = vmatprep.subr.bf16.mxu0 0
      %180 = vmatpush1.bf16.msra.mxu0 0
      %181 = vmatprep.subr.bf16.mxu0 0
      %182 = vmatpush1.bf16.msra.mxu0 0
      %183 = vmatprep.subr.bf16.mxu0 0
      %184 = vmatpush1.bf16.msra.mxu0 0
      %185 = vmatprep.subr.bf16.mxu0 0
      %186 = vmatpush1.bf16.msra.mxu0 0
      %187 = vmatprep.subr.bf16.mxu0 0
      %188 = vmatpush1.bf16.msra.mxu0 0
      %189 = vmatprep.subr.bf16.mxu0 0
      %190 = vmatpush1.bf16.msra.mxu0 0
      %191 = vmatprep.subr.bf16.mxu0 0
      %192 = vmatpush1.bf16.msra.mxu0 0
      %193 = vmatprep.subr.bf16.mxu0 0
      %194 = vmatpush1.bf16.msra.mxu0 0
      %195 = vmatprep.subr.bf16.mxu0 0
      %196 = vmatpush1.bf16.msra.mxu0 0
      %197 = vmatprep.subr.bf16.mxu0 0
      %198 = vmatpush1.bf16.msra.mxu0 0
      %199 = vmatprep.mubr.bf16.mxu0 0
      %200 = vmatmul.mubr.bf16.gmra.mrb[0].mxu0 %v161
      %v201 = vpop.f32.mrb[0].mxu0
      %v202 = vadd.f32 %v157, %v201
      %v203 = vpop.f32.mrb[0].mxu0
      %v204 = vpop.f32.mrb[0].mxu0
      %v205 = vadd.f32 %v157, %v204
      %v206 = vpop.f32.mrb[0].mxu0
      %207 = vdwg.mxu0
      %v208 = vadd.f32 %v202, %v134
      %v209 = vadd.f32 %v205, %v137
      %v210 = vmin.f32 %v208, 20.0
      %v211 = vmin.f32 %v209, 20.0
      %v212 = vmul.f32 %v210, 1.442695
      %v213 = vpow.pop %v212
      %v214 = vmul.f32 %v211, 1.442695
      %v215 = vpow.pop %v214
      %v216 = vadd.f32 %v213, 2.0
      %v217 = vadd.f32 %v215, 2.0
      %v218 = vmul.f32 %v213, %v216
      %v219 = vmul.f32 %v215, %v217
      %v220 = vmul.f32 %v208, %v218
      %v221 = vmul.f32 %v209, %v219
      %v222 = vadd.f32 %v218, 2.0
      %v223 = vadd.f32 %v219, 2.0
      %v224 = vrcp.pop %v222
      %v225 = vrcp.pop %v223
      %v226 = vmul.f32 %v220, %v224
      %v227 = vmul.f32 %v221, %v225
      %vm228 = vcmp.gt.f32.partialorder %v208, 20.0
      %vm229 = vcmp.gt.f32.partialorder %v209, 20.0
      %v230 = vsel %vm228, %v208, %v226
      %v231 = vsel %vm229, %v209, %v227
      %v232 = vpack.c.bf16 %v231, %v230
      %v234 = vlaneseq
      %v235 = vshrl.u32 %v234, 7
      %v236 = vsub.s32 0, %v235
      %v237 = vrot.slane %v74, %v236
      %v243 = vunpack.c.l.b16 %v62
      %v244 = vunpack.c.l.b16 %v63
      %v245 = vunpack.c.l.b16 %v64
      %v246 = vunpack.c.l.b16 %v65
      %v247 = vpack.c.b16 %v244, %v243
      %v248 = vpack.c.b16 %v246, %v245
      %vm251 = vcmask 261120
      %v253 = vsel %vm251, %v232, 0
      %255 = vmatprep.subr.bf16.mxu0 0
      %256 = vmatpush1.bf16.msra.mxu0 %v247
      %257 = vmatprep.subr.bf16.mxu0 0
      %258 = vmatpush1.bf16.msra.mxu0 %v248
      %259 = vmatprep.subr.bf16.mxu0 0
      %260 = vmatpush1.bf16.msra.mxu0 0
      %261 = vmatprep.subr.bf16.mxu0 0
      %262 = vmatpush1.bf16.msra.mxu0 0
      %263 = vmatprep.subr.bf16.mxu0 0
      %264 = vmatpush1.bf16.msra.mxu0 0
      %265 = vmatprep.subr.bf16.mxu0 0
      %266 = vmatpush1.bf16.msra.mxu0 0
      %267 = vmatprep.subr.bf16.mxu0 0
      %268 = vmatpush1.bf16.msra.mxu0 0
      %269 = vmatprep.subr.bf16.mxu0 0
      %270 = vmatpush1.bf16.msra.mxu0 0
      %271 = vmatprep.subr.bf16.mxu0 0
      %272 = vmatpush1.bf16.msra.mxu0 0
      %273 = vmatprep.subr.bf16.mxu0 0
      %274 = vmatpush1.bf16.msra.mxu0 0
      %275 = vmatprep.subr.bf16.mxu0 0
      %276 = vmatpush1.bf16.msra.mxu0 0
      %277 = vmatprep.subr.bf16.mxu0 0
      %278 = vmatpush1.bf16.msra.mxu0 0
      %279 = vmatprep.subr.bf16.mxu0 0
      %280 = vmatpush1.bf16.msra.mxu0 0
      %281 = vmatprep.subr.bf16.mxu0 0
      %282 = vmatpush1.bf16.msra.mxu0 0
      %283 = vmatprep.subr.bf16.mxu0 0
      %284 = vmatpush1.bf16.msra.mxu0 0
      %285 = vmatprep.subr.bf16.mxu0 0
      %286 = vmatpush1.bf16.msra.mxu0 0
      %287 = vmatprep.mubr.bf16.mxu0 0
      %288 = vmatmul.mubr.bf16.gmra.mrb[0].mxu0 %v253
      %v289 = vpop.f32.mrb[0].mxu0
      %v290 = vadd.f32 %v237, %v289
      %v291 = vpop.f32.mrb[0].mxu0
      %v292 = vpop.f32.mrb[0].mxu0
      %v293 = vadd.f32 %v237, %v292
      %v294 = vpop.f32.mrb[0].mxu0
      %295 = vdwg.mxu0
      %v296 = vmin.f32 %v290, 20.0
      %v297 = vmin.f32 %v293, 20.0
      %v298 = vmul.f32 %v296, 1.442695
      %v299 = vpow.pop %v298
      %v300 = vmul.f32 %v297, 1.442695
      %v301 = vpow.pop %v300
      %v302 = vadd.f32 %v299, 2.0
      %v303 = vadd.f32 %v301, 2.0
      %v304 = vmul.f32 %v299, %v302
      %v305 = vmul.f32 %v301, %v303
      %v306 = vmul.f32 %v290, %v304
      %v307 = vmul.f32 %v293, %v305
      %v308 = vadd.f32 %v304, 2.0
      %v309 = vadd.f32 %v305, 2.0
      %v310 = vrcp.pop %v308
      %v311 = vrcp.pop %v309
      %v312 = vmul.f32 %v306, %v310
      %v313 = vmul.f32 %v307, %v311
      %vm314 = vcmp.gt.f32.partialorder %v290, 20.0
      %vm315 = vcmp.gt.f32.partialorder %v293, 20.0
      %v316 = vsel %vm314, %v290, %v312
      %v317 = vsel %vm315, %v293, %v313
      %v318 = vpack.c.bf16 %v317, %v316
      %v320 = vlaneseq
      %v321 = vshrl.u32 %v320, 7
      %v322 = vsub.s32 0, %v321
      %v323 = vrot.slane %v75, %v322
      %v329 = vunpack.c.l.b16 %v66
      %v330 = vunpack.c.l.b16 %v67
      %v331 = vunpack.c.l.b16 %v68
      %v332 = vunpack.c.l.b16 %v69
      %v333 = vpack.c.b16 %v330, %v329
      %v334 = vpack.c.b16 %v332, %v331
      %v338 = vsel %vm251, %v318, 0
      %340 = vmatprep.subr.bf16.mxu0 0
      %341 = vmatpush1.bf16.msra.mxu0 %v333
      %342 = vmatprep.subr.bf16.mxu0 0
      %343 = vmatpush1.bf16.msra.mxu0 %v334
      %344 = vmatprep.subr.bf16.mxu0 0
      %345 = vmatpush1.bf16.msra.mxu0 0
      %346 = vmatprep.subr.bf16.mxu0 0
      %347 = vmatpush1.bf16.msra.mxu0 0
      %348 = vmatprep.subr.bf16.mxu0 0
      %349 = vmatpush1.bf16.msra.mxu0 0
      %350 = vmatprep.subr.bf16.mxu0 0
      %351 = vmatpush1.bf16.msra.mxu0 0
      %352 = vmatprep.subr.bf16.mxu0 0
      %353 = vmatpush1.bf16.msra.mxu0 0
      %354 = vmatprep.subr.bf16.mxu0 0
      %355 = vmatpush1.bf16.msra.mxu0 0
      %356 = vmatprep.subr.bf16.mxu0 0
      %357 = vmatpush1.bf16.msra.mxu0 0
      %358 = vmatprep.subr.bf16.mxu0 0
      %359 = vmatpush1.bf16.msra.mxu0 0
      %360 = vmatprep.subr.bf16.mxu0 0
      %361 = vmatpush1.bf16.msra.mxu0 0
      %362 = vmatprep.subr.bf16.mxu0 0
      %363 = vmatpush1.bf16.msra.mxu0 0
      %364 = vmatprep.subr.bf16.mxu0 0
      %365 = vmatpush1.bf16.msra.mxu0 0
      %366 = vmatprep.subr.bf16.mxu0 0
      %367 = vmatpush1.bf16.msra.mxu0 0
      %368 = vmatprep.subr.bf16.mxu0 0
      %369 = vmatpush1.bf16.msra.mxu0 0
      %370 = vmatprep.subr.bf16.mxu0 0
      %371 = vmatpush1.bf16.msra.mxu0 0
      %372 = vmatprep.mubr.bf16.mxu0 0
      %373 = vmatmul.mubr.bf16.gmra.mrb[0].mxu0 %v338
      %v374 = vpop.f32.mrb[0].mxu0
      %v375 = vadd.f32 %v323, %v374
      %v376 = vpop.f32.mrb[0].mxu0
      %v377 = vpop.f32.mrb[0].mxu0
      %v378 = vadd.f32 %v323, %v377
      %v379 = vpop.f32.mrb[0].mxu0
      %380 = vdwg.mxu0
      %v381 = vmin.f32 %v375, 20.0
      %v382 = vmin.f32 %v378, 20.0
      %v383 = vmul.f32 %v381, 1.442695
      %v384 = vpow.pop %v383
      %v385 = vmul.f32 %v382, 1.442695
      %v386 = vpow.pop %v385
      %v387 = vadd.f32 %v384, 2.0
      %v388 = vadd.f32 %v386, 2.0
      %v389 = vmul.f32 %v384, %v387
      %v390 = vmul.f32 %v386, %v388
      %v391 = vmul.f32 %v375, %v389
      %v392 = vmul.f32 %v378, %v390
      %v393 = vadd.f32 %v389, 2.0
      %v394 = vadd.f32 %v390, 2.0
      %v395 = vrcp.pop %v393
      %v396 = vrcp.pop %v394
      %v397 = vmul.f32 %v391, %v395
      %v398 = vmul.f32 %v392, %v396
      %vm399 = vcmp.gt.f32.partialorder %v375, 20.0
      %vm400 = vcmp.gt.f32.partialorder %v378, 20.0
      %v401 = vsel %vm399, %v375, %v397
      %v402 = vsel %vm400, %v378, %v398
      %v403 = vpack.c.bf16 %v402, %v401
      %v405 = vlaneseq
      %v406 = vshrl.u32 %v405, 7
      %v407 = vsub.s32 0, %v406
      %v408 = vrot.slane %v76, %v407
      %v414 = vunpack.c.l.b16 %v70
      %v415 = vunpack.c.l.b16 %v71
      %v416 = vunpack.c.l.b16 %v72
      %v417 = vunpack.c.l.b16 %v73
      %v418 = vpack.c.b16 %v415, %v414
      %v419 = vpack.c.b16 %v417, %v416
      %v423 = vsel %vm251, %v403, 0
      %425 = vmatprep.subr.bf16.mxu0 0
      %426 = vmatpush1.bf16.msra.mxu0 %v418
      %427 = vmatprep.subr.bf16.mxu0 0
      %428 = vmatpush1.bf16.msra.mxu0 %v419
      %429 = vmatprep.subr.bf16.mxu0 0
      %430 = vmatpush1.bf16.msra.mxu0 0
      %431 = vmatprep.subr.bf16.mxu0 0
      %432 = vmatpush1.bf16.msra.mxu0 0
      %433 = vmatprep.subr.bf16.mxu0 0
      %434 = vmatpush1.bf16.msra.mxu0 0
      %435 = vmatprep.subr.bf16.mxu0 0
      %436 = vmatpush1.bf16.msra.mxu0 0
      %437 = vmatprep.subr.bf16.mxu0 0
      %438 = vmatpush1.bf16.msra.mxu0 0
      %439 = vmatprep.subr.bf16.mxu0 0
      %440 = vmatpush1.bf16.msra.mxu0 0
      %441 = vmatprep.subr.bf16.mxu0 0
      %442 = vmatpush1.bf16.msra.mxu0 0
      %443 = vmatprep.subr.bf16.mxu0 0
      %444 = vmatpush1.bf16.msra.mxu0 0
      %445 = vmatprep.subr.bf16.mxu0 0
      %446 = vmatpush1.bf16.msra.mxu0 0
      %447 = vmatprep.subr.bf16.mxu0 0
      %448 = vmatpush1.bf16.msra.mxu0 0
      %449 = vmatprep.subr.bf16.mxu0 0
      %450 = vmatpush1.bf16.msra.mxu0 0
      %451 = vmatprep.subr.bf16.mxu0 0
      %452 = vmatpush1.bf16.msra.mxu0 0
      %453 = vmatprep.subr.bf16.mxu0 0
      %454 = vmatpush1.bf16.msra.mxu0 0
      %455 = vmatprep.subr.bf16.mxu0 0
      %456 = vmatpush1.bf16.msra.mxu0 0
      %457 = vmatprep.mubr.bf16.mxu0 0
      %458 = vmatmul.mubr.bf16.gmra.mrb[0].mxu0 %v423
      %v459 = vpop.f32.mrb[0].mxu0
      %v460 = vadd.f32 %v408, %v459
      %v461 = vpop.f32.mrb[0].mxu0
      %v462 = vpop.f32.mrb[0].mxu0
      %v463 = vadd.f32 %v408, %v462
      %v464 = vpop.f32.mrb[0].mxu0
      %465 = vdwg.mxu0
      %s466 = sld [smem:[#allocation2 + %s143]]
      %s467 = sshra.s32 %s143, 7
      %s468 = sand.u32 %s143, 127
      %s469 = sadd.s32 %s467, 1
      %s470 = smul.u32 %s469, 128
      %s471 = sshra.s32 %s143, 7
      %s472 = sand.u32 %s143, 127
      %s473 = sadd.s32 %s470, %s472
      %s474 = sld [smem:[#allocation2 + %s473]]
      %s475 = sadd.s32 %s467, 2
      %s476 = smul.u32 %s475, 128
      %s477 = sadd.s32 %s476, %s472
      %s478 = sld [smem:[#allocation2 + %s477]]
      %s479 = sadd.s32 %s467, 3
      %s480 = smul.u32 %s479, 128
      %s481 = sadd.s32 %s480, %s472
      %s482 = sld [smem:[#allocation2 + %s481]]
      %s483 = sadd.s32 %s467, 4
      %s484 = smul.u32 %s483, 128
      %s485 = sadd.s32 %s484, %s472
      %s486 = sld [smem:[#allocation2 + %s485]]
      %v487 = vstv %s466
      %v488 = vmul.f32 %v487, %v148
      %v489 = vmul.f32 %v487, %v149
      %v490 = vstv %s474
      %v491 = vmul.f32 %v490, %v460
      %v492 = vmul.f32 %v490, %v463
      %v493 = vsub.f32 %v488, %v491
      %v494 = vsub.f32 %v489, %v492
      %v495 = vmax.f32 %v493, -1.0
      %v496 = vmax.f32 %v494, -1.0
      %v497 = vmin.f32 %v495, 1.0
      %v498 = vmin.f32 %v496, 1.0
      %v499 = vstv %s478
      %v500 = vmul.f32 %v499, %v497
      %v501 = vmul.f32 %v499, %v498
      %v502 = vstv %s482
      %v503 = vmul.f32 %v502, %v148
      %v504 = vmul.f32 %v502, %v149
      %v505 = vadd.f32 %v500, %v503
      %v506 = vadd.f32 %v501, %v504
      %s507 = smul.u32 %s143, 16
      %s508 = scalar_lea.vmem %s4, %s507
      %v509 = vld [vmem:[%s508] sm:$0xff]
      %v510 = vld [vmem:[%s508 + $0x8] sm:$0xff]
      %v511 = vstv %s486
      %v512 = vmul.f32 %v511, %v509
      %v513 = vmul.f32 %v511, %v510
      %v514 = vadd.f32 %v505, %v512
      %v515 = vadd.f32 %v506, %v513
    $region66: #{diffusion_forward.3} parent=1 // loop_footer
      %s147 = sadd.s32 1, %s143
    $region67: #{diffusion_forward.3} parent=1 // loop_footer_branch
      %142 = sbr.rel target = $region63
    $region68: #{diffusion_forward.3} parent=1 // loop_exit
      _
    %v516 = vmax.f32 %v148, -1.0
    %v517 = vmax.f32 %v149, -1.0
    %v518 = vmin.f32 %v516, 1.0
    %v519 = vmin.f32 %v517, 1.0
    %vm520 = vcmask 31744
    %521 = vst.msk [vmem:[%s14] sm:$0xff] %vm520, %v518
    %522 = vst.msk [vmem:[%s14 + $0x8] sm:$0xff] %vm520, %v519
    // Predicated region
    $region69: #{diffusion_forward.3} parent=1 // pred_check
      _
    $region70: #{diffusion_forward.3} parent=1 // pred_check_branch
      %524 = sbr.rel (0) target = $region72
    $region71: #{diffusion_forward.3} parent=1 // pred_region
      _
    $region72: #{diffusion_forward.3} parent=1 // pred_fallthru
      _
    // Predicated region
    $region73: #{diffusion_forward.3} parent=1 // pred_check
      _
    $region74: #{diffusion_forward.3} parent=1 // pred_check_branch
      %526 = sbr.rel (0) target = $region76
    $region75: #{diffusion_forward.3} parent=1 // pred_region
      _
    $region76: #{diffusion_forward.3} parent=1 // pred_fallthru
      _
    %527 = vsyncpa [#allocation3], 1

</llo_original>
